<compile_context>
chip_gen: v7x
topology: tpu7x:2x2x1
jax: 0.10.0
libtpu: 0.0.40
codegen_flags: <defaults>
</compile_context>

<pallas_src>
import jax
import jax.numpy as jnp
from jax.experimental import pallas as pl
from jax.experimental.pallas import tpu as pltpu


def _m_kernel_fused(x_ref, w1_ref, w2_ref, o_ref):
    # w1/w2 same shape: single reduce tree over the f32 difference.
    s = jnp.sum(w2_ref[...].astype(jnp.float32) - w1_ref[...].astype(jnp.float32))
    o_ref[...] = (x_ref[...].astype(jnp.float32) + 2.0 * s).astype(o_ref.dtype)


def _m_kernel_split(x_ref, w1_ref, w2_ref, o_ref):
    # Fallback for mismatched leading dims (still matching trailing dims).
    s = (jnp.sum(w2_ref[...].astype(jnp.float32))
         - jnp.sum(w1_ref[...].astype(jnp.float32)))
    o_ref[...] = (x_ref[...].astype(jnp.float32) + 2.0 * s).astype(o_ref.dtype)


def m_forward(x, w1, w2):
    """Pallas equivalent of M.forward(x, w1, w2)."""
    assert w1.shape[1:] == w2.shape[1:], \
        "torch.cat along dim 0 requires matching trailing dims"

    n = x.size
    # Lane-dense (and sublane-dense) 2-D slab for x / output.
    if n % 128 == 0:
        x2 = x.reshape(n // 128, 128)
        pad = 0
    else:
        padded = ((n + 1023) // 1024) * 1024     # rows multiple of 8, lanes = 128
        pad = padded - n
        x2 = jnp.pad(x.reshape(-1), (0, pad)).reshape(padded // 128, 128)

    # Flatten the tiny reduction operands into single lane-dense rows.
    w1f = w1.reshape(1, w1.size)
    w2f = w2.reshape(1, w2.size)

    kernel = _m_kernel_fused if w1.shape == w2.shape else _m_kernel_split

    itm = jnp.dtype(x.dtype).itemsize
    cost = pl.CostEstimate(
        flops=2 * n + w1.size + w2.size,
        transcendentals=0,
        bytes_accessed=itm * 2 * n
        + jnp.dtype(w1.dtype).itemsize * w1.size
        + jnp.dtype(w2.dtype).itemsize * w2.size,
    )

    out2 = pl.pallas_call(
        kernel,
        out_shape=jax.ShapeDtypeStruct(x2.shape, x.dtype),
        in_specs=[
            pl.BlockSpec(memory_space=pltpu.MemorySpace.VMEM),
            pl.BlockSpec(memory_space=pltpu.MemorySpace.VMEM),
            pl.BlockSpec(memory_space=pltpu.MemorySpace.VMEM),
        ],
        out_specs=pl.BlockSpec(memory_space=pltpu.MemorySpace.VMEM),
        input_output_aliases={0: 0},   # output reuses x2's buffer
        cost_estimate=cost,
    )(x2, w1f, w2f)

    if pad:
        out2 = out2.reshape(-1)[:n]
    return out2.reshape(x.shape)


def m_reference(x, w1, w2):
    m1 = jnp.sum(jnp.concatenate([-w1, w2], axis=0))
    m2 = jnp.sum(jnp.concatenate([-w1, w2], axis=0))
    return x + jnp.max(m1) + jnp.max(m2)


if __name__ == "__main__":
    key = jax.random.PRNGKey(0)
    kx, k1, k2 = jax.random.split(key, 3)

    x = jax.random.normal(kx, (2, 4, 16, 16), dtype=jnp.float32)
    w1 = jax.random.normal(k1, (4, 16), dtype=jnp.float32)
    w2 = jax.random.normal(k2, (4, 16), dtype=jnp.float32)

    out = m_forward(x, w1, w2)
    jax.block_until_ready(out)

    ref = m_reference(x, w1, w2)
    assert out.shape == x.shape and out.dtype == x.dtype
    assert jnp.allclose(out, ref, atol=1e-4, rtol=1e-4), "mismatch vs reference"

    print("KERNEL_OK")
</pallas_src>

<mosaic_0001>
module attributes {stable_mosaic.version = 11 : i64} {
  func.func @_m_kernel_fused(%arg0: memref<16x128xf32, #tpu.memory_space<vmem>>, %arg1: memref<1x64xf32, #tpu.memory_space<vmem>>, %arg2: memref<1x64xf32, #tpu.memory_space<vmem>>, %arg3: memref<16x128xf32, #tpu.memory_space<vmem>>) attributes {dimension_semantics = [], scalar_prefetch = 0 : i64, scratch_operands = 0 : i64, tpu.core_type = #tpu.core_type<tc>} {
    %c0 = arith.constant 0 : index
    %c0_0 = arith.constant 0 : index
    %0 = vector.load %arg2[%c0, %c0_0] : memref<1x64xf32, #tpu.memory_space<vmem>>, vector<1x64xf32>
    %c0_1 = arith.constant 0 : index
    %c0_2 = arith.constant 0 : index
    %1 = vector.load %arg1[%c0_1, %c0_2] : memref<1x64xf32, #tpu.memory_space<vmem>>, vector<1x64xf32>
    %2 = arith.subf %0, %1 : vector<1x64xf32>
    %3 = vector.shape_cast %2 : vector<1x64xf32> to vector<1x1x64xf32>
    %cst = arith.constant dense<0.000000e+00> : vector<1xf32>
    %4 = vector.multi_reduction <add>, %3, %cst [1, 2] : vector<1x1x64xf32> to vector<1xf32>
    %5 = vector.shape_cast %4 : vector<1xf32> to vector<1x1x1xf32>
    %6 = vector.extract %5[0, 0, 0] : f32 from vector<1x1x1xf32>
    %c0_3 = arith.constant 0 : index
    %c0_4 = arith.constant 0 : index
    %7 = vector.load %arg0[%c0_3, %c0_4] : memref<16x128xf32, #tpu.memory_space<vmem>>, vector<16x128xf32>
    %cst_5 = arith.constant 2.000000e+00 : f32
    %8 = arith.mulf %cst_5, %6 : f32
    %9 = vector.broadcast %8 : f32 to vector<16x128xf32>
    %10 = arith.addf %7, %9 : vector<16x128xf32>
    %c0_6 = arith.constant 0 : index
    %c0_7 = arith.constant 0 : index
    %11 = vector.load %arg3[%c0_6, %c0_7] : memref<16x128xf32, #tpu.memory_space<vmem>>, vector<16x128xf32>
    tpu.vector_store %arg3[%c0_6, %c0_7], %10 {strides = array<i32>} : memref<16x128xf32, #tpu.memory_space<vmem>>, vector<16x128xf32>,
    return
  }
}

</mosaic_0001>

<llo_original>
// kernel: tpu_custom_call.1
$region0: #{tpu_custom_call.1}
  #allocation0 [shape = 'u32[]', space=smem, size = 0x4, offset = 0x4, fixed_abs, tag = 'smem constant byte address 0x4 - core index']
  #allocation1 [shape = 'u32[144,128]{1,0:T(1,128)}', space=vmem, size = 0x12000, scoped, tag = 'internal scratch']
  %s0 = inlined_call_operand.hbm [shape: f32[16,128], index: 0, kind: input, shape index: {}, may-alias: {0,3}]
  %s1 = inlined_call_operand.vmem [shape: f32[1,64], index: 1, kind: input, shape index: {}]
  %s2 = inlined_call_operand.vmem [shape: f32[1,64], index: 2, kind: input, shape index: {}]
  %s3 = inlined_call_operand.hbm [shape: f32[16,128], index: 3, kind: output, shape index: {}, may-alias: {0,3}]
  %s4 = sld [smem:[#allocation0]]
  $region26: #{tpu_custom_call.1} parent=0
    _
  %s6 = ssub.s32 1, %s4
  %s7 = scalar_select 0, %s6, %s4
  $region1: #{tpu_custom_call.1} parent=0
    #allocation2 [shape = 'u8[8192]{0}', space=vmem, size = 0x2000, scoped, tag = 'input window, operand 0, single buffered']
    #allocation3 [shape = 's32[1]{0}', space=sflag, size = 0x4, scoped, tag = 'scoped memory for tpu_custom_call.1']
    #allocation4 [shape = 's32[1]{0}', space=sflag, size = 0x4, scoped, tag = 'scoped memory for tpu_custom_call.1']
    #allocation5 [shape = 'u8[8192]{0}', space=vmem, size = 0x2000, scoped, tag = 'output window, operand 0, single buffered']
    %8 = vsyncpa [#allocation3], 0
    %9 = vsyncpa [#allocation4], 0
    // Predicated region
    $region2: #{tpu_custom_call.1} parent=1 // pred_check
      _
    $region3: #{tpu_custom_call.1} parent=1 // pred_check_branch
      %11 = sbr.rel (0) target = $region5
    $region4: #{tpu_custom_call.1} parent=1 // pred_region
      %s13 = ssub.s32 256, 256
      %14 = vsyncadd [#allocation3], %s13
      %s15 = sshll.u32 [#allocation2], 4
      %s16 = int_to_ptr.vmem [resolvable:$true] %s15
      %21 = dma.hbm_to_vmem [thread:$0]  %s0, 256, %s16, [#allocation3], 128, 128, 8
    $region5: #{tpu_custom_call.1} parent=1 // pred_fallthru
      _
    // Predicated region
    $region6: #{tpu_custom_call.1} parent=1 // pred_check
      _
    $region7: #{tpu_custom_call.1} parent=1 // pred_check_branch
      %23 = sbr.rel (0) target = $region9
    $region8: #{tpu_custom_call.1} parent=1 // pred_region
      _
    $region9: #{tpu_custom_call.1} parent=1 // pred_fallthru
      _
    // Predicated region
    $region10: #{tpu_custom_call.1} parent=1 // pred_check
      _
    $region11: #{tpu_custom_call.1} parent=1 // pred_check_branch
      %25 = sbr.rel (0) target = $region13
    $region12: #{tpu_custom_call.1} parent=1 // pred_region
      _
    $region13: #{tpu_custom_call.1} parent=1 // pred_fallthru
      _
    // Predicated region
    $region14: #{tpu_custom_call.1} parent=1 // pred_check
      _
    $region15: #{tpu_custom_call.1} parent=1 // pred_check_branch
      %27 = sbr.rel (0) target = $region17
    $region16: #{tpu_custom_call.1} parent=1 // pred_region
      %28 = dma.done [#allocation3], 256
    $region17: #{tpu_custom_call.1} parent=1 // pred_fallthru
      _
    %v29 = vld [vmem:[%s2] sm:$0x1]
    %v30 = vld [vmem:[%s1] sm:$0x1]
    %v31 = vsub.f32 %v29, %v30
    %vm32 = vcmask 516096
    %v33 = vsel %vm32, %v31, 0.0
    %34 = vadd.xlane.f32.xlu0 %v33
    %v35 = vpop.xlane.xlu0 %34
    %v36 = vrot.slane %v35, 4
    %v37 = vadd.f32 %v35, %v36
    %v38 = vrot.slane %v37, 2
    %v39 = vadd.f32 %v37, %v38
    %v40 = vrot.slane %v39, 1
    %v41 = vadd.f32 %v39, %v40
    %s42 = vtos %v41
    %v43 = vld [vmem:[#allocation2] sm:$0xff]
    %v44 = vld [vmem:[#allocation2 + $0x8] sm:$0xff]
    %s45 = smul.f32 %s42, 2.0
    %v46 = vstv %s45
    %v47 = vadd.f32 %v43, %v46
    %v48 = vadd.f32 %v44, %v46
    %49 = vst [vmem:[#allocation5] sm:$0xff] %v47
    %50 = vst [vmem:[#allocation5 + $0x8] sm:$0xff] %v48
    // Predicated region
    $region18: #{tpu_custom_call.1} parent=1 // pred_check
      _
    $region19: #{tpu_custom_call.1} parent=1 // pred_check_branch
      %52 = sbr.rel (0) target = $region21
    $region20: #{tpu_custom_call.1} parent=1 // pred_region
      %s54 = ssub.s32 256, 256
      %55 = vsyncadd [#allocation4], %s54
      %s56 = sshll.u32 [#allocation5], 4
      %s57 = int_to_ptr.vmem [resolvable:$true] %s56
      %62 = dma.vmem_to_hbm [thread:$0]  %s57, 256, %s3, [#allocation4], 128, 128, 8
    $region21: #{tpu_custom_call.1} parent=1 // pred_fallthru
      _
    // Predicated region
    $region22: #{tpu_custom_call.1} parent=1 // pred_check
      _
    $region23: #{tpu_custom_call.1} parent=1 // pred_check_branch
      %64 = sbr.rel (0) target = $region25
    $region24: #{tpu_custom_call.1} parent=1 // pred_region
      %65 = dma.done [#allocation4], 256
    $region25: #{tpu_custom_call.1} parent=1 // pred_fallthru
      _
    %66 = vsyncpa [#allocation3], 1
    %67 = vsyncpa [#allocation4], 1

</llo_original>
